<compile_context>
chip_gen: v5e
topology: v5e:2x2
jax: 0.10.0
libtpu: 0.0.40
codegen_flags: <defaults>
</compile_context>

<pallas_src>
import functools

import jax
import jax.numpy as jnp
from jax import lax
from jax.experimental import pallas as pl
from jax.experimental.pallas import tpu as pltpu

EPS = 1e-5
LANE = 128
SUBLANE = 8


def _round_up(v, m):
    return (v + m - 1) // m * m


def conv_bn_fused_kernel(x_ref, w_ref, mask_ref, gamma_ref, beta_ref,
                         out_ref, cols_ref, *,
                         kh_size, kw_size, pad_wp, tap_rows, cin, n_cols,
                         count, apply_bn):
    # x_ref:    (Cin, N*S_pad + tail)   zero-padded, flattened, lane-dense batch
    # w_ref:    (Cout, KH*KW*tap_rows)  weights; zero rows for tap padding
    # mask_ref: (1, N*S_pad)            1.0 at valid (ho<Ho, wo<Wo) positions
    # gamma_ref/beta_ref: (Cout, 1)
    # out_ref:  (Cout, N*S_pad)         conv(+BN) output in padded-flat coords
    # cols_ref: (KH*KW*tap_rows, N*S_pad) VMEM im2col scratch
    xf = x_ref[...]

    # Zero the scratch once so the tap-padding rows can't be NaN garbage
    # (their weight rows are zero, but 0 * NaN = NaN).
    cols_ref[...] = jnp.zeros_like(cols_ref)

    # Build im2col with pure lane shifts: in padded-flat coordinates the tap
    # (kh, kw) contribution at column p is x[p + kh*Wp + kw].  Each tap block
    # lands on an 8-sublane-aligned row offset of the scratch.
    for kh in range(kh_size):
        for kw in range(kw_size):
            t = kh * kw_size + kw
            delta = kh * pad_wp + kw
            cols_ref[pl.ds(t * tap_rows, cin), :] = lax.slice(
                xf, (0, delta), (cin, delta + n_cols))

    # Single lane-dense MXU matmul over the whole batch.
    acc = jnp.dot(w_ref[...], cols_ref[...],
                  preferred_element_type=jnp.float32)      # (Cout, N*S_pad)

    if apply_bn:
        mask = mask_ref[...]                                # (1, N*S_pad)
        inv_count = 1.0 / count
        ssum = jnp.sum(acc * mask, axis=1, keepdims=True)   # (Cout, 1)
        ssq = jnp.sum(acc * acc * mask, axis=1, keepdims=True)
        mean = ssum * inv_count
        var = ssq * inv_count - mean * mean                 # biased variance
        inv = lax.rsqrt(var + EPS)
        scale = gamma_ref[...] * inv
        shift = beta_ref[...] - mean * scale
        out_ref[...] = acc * scale + shift                  # broadcast FMA
    else:
        out_ref[...] = acc


def conv_bn(x_nchw, weight_oihw, gamma, beta, *, stride=1, padding=1, bn=True):
    """ConvBn forward. x_nchw: (N, Cin, H, W). Returns (N, Cout, Ho, Wo)."""
    assert stride == 1, "only stride=1 (module default) is implemented"
    N, Cin, H, W = x_nchw.shape
    Cout, Cin_w, KH, KW = weight_oihw.shape
    assert Cin_w == Cin

    Hp, Wp = H + 2 * padding, W + 2 * padding
    Ho, Wo = Hp - KH + 1, Wp - KW + 1
    S = Hp * Wp
    S_pad = _round_up(S, LANE)              # 128-aligned per-image lane span
    n_cols = N * S_pad                      # matmul lane width (whole batch)
    max_delta = (KH - 1) * Wp + (KW - 1)
    tail = _round_up(max_delta, LANE)       # slack so every tap slice is in-bounds
    tap_rows = _round_up(Cin, SUBLANE)      # 8-aligned rows per tap
    k_pad = KH * KW * tap_rows

    f32 = jnp.float32

    # ---- wrapper-side layout plumbing (tiny; XLA fuses the pads/reshapes) ----
    xt = jnp.transpose(x_nchw.astype(f32), (1, 0, 2, 3))          # (Cin,N,H,W)
    xt = jnp.pad(xt, ((0, 0), (0, 0),
                      (padding, padding), (padding, padding)))    # (Cin,N,Hp,Wp)
    xt = xt.reshape(Cin, N, S)
    xt = jnp.pad(xt, ((0, 0), (0, 0), (0, S_pad - S)))            # (Cin,N,S_pad)
    x_flat = xt.reshape(Cin, n_cols)
    x_flat = jnp.pad(x_flat, ((0, 0), (0, tail)))                 # (Cin,n_cols+tail)

    # (Cout, KH*KW*tap_rows), row order (kh, kw, cin) with zero padding rows.
    w_t = jnp.transpose(weight_oihw.astype(f32), (0, 2, 3, 1))    # (Cout,KH,KW,Cin)
    w_t = jnp.pad(w_t, ((0, 0), (0, 0), (0, 0), (0, tap_rows - Cin)))
    w_mat = w_t.reshape(Cout, k_pad)

    # Validity mask over padded-flat columns.
    p = jnp.arange(n_cols, dtype=jnp.int32)
    s = p % S_pad
    mask = (((s // Wp) < Ho) & ((s % Wp) < Wo)).astype(f32).reshape(1, n_cols)

    g2 = gamma.reshape(Cout, 1).astype(f32)
    b2 = beta.reshape(Cout, 1).astype(f32)

    kernel = functools.partial(
        conv_bn_fused_kernel, kh_size=KH, kw_size=KW, pad_wp=Wp,
        tap_rows=tap_rows, cin=Cin, n_cols=n_cols,
        count=float(N * Ho * Wo), apply_bn=bn)

    y_flat = pl.pallas_call(
        kernel,
        grid=(1,),
        in_specs=[
            pl.BlockSpec((Cin, n_cols + tail), lambda i: (0, 0)),
            pl.BlockSpec((Cout, k_pad), lambda i: (0, 0)),
            pl.BlockSpec((1, n_cols), lambda i: (0, 0)),
            pl.BlockSpec((Cout, 1), lambda i: (0, 0)),
            pl.BlockSpec((Cout, 1), lambda i: (0, 0)),
        ],
        out_specs=pl.BlockSpec((Cout, n_cols), lambda i: (0, 0)),
        out_shape=jax.ShapeDtypeStruct((Cout, n_cols), f32),
        scratch_shapes=[pltpu.VMEM((k_pad, n_cols), f32)],
        compiler_params=pltpu.CompilerParams(
            dimension_semantics=("arbitrary",)),
    )(x_flat, w_mat, mask, g2, b2)

    # padded-flat (Cout, N*S_pad) -> (N, Cout, Ho, Wo): cheap strided slice +
    # transpose in XLA (layout plumbing, not compute).
    y = y_flat.reshape(Cout, N, S_pad)[:, :, :S].reshape(Cout, N, Hp, Wp)
    y = y[:, :, :Ho, :Wo]
    return jnp.transpose(y, (1, 0, 2, 3))


def _reference(x_nchw, weight_oihw, gamma, beta, *, padding=1, bn=True):
    """Pure-JAX reference matching PyTorch Conv2d + BatchNorm2d(train)."""
    out = lax.conv_general_dilated(
        x_nchw.astype(jnp.float32),
        weight_oihw.astype(jnp.float32),
        window_strides=(1, 1),
        padding=[(padding, padding), (padding, padding)],
        dimension_numbers=("NCHW", "OIHW", "NCHW"),
    )
    if bn:
        mean = out.mean(axis=(0, 2, 3), keepdims=True)
        var = ((out - mean) ** 2).mean(axis=(0, 2, 3), keepdims=True)
        out = (out - mean) / jnp.sqrt(var + EPS) * gamma.reshape(1, -1, 1, 1) + \
              beta.reshape(1, -1, 1, 1)
    return out


if __name__ == "__main__":
    # Module config: ConvBn(kernel_size=3, in_channels=4, out_channels=8,
    #                       stride=1, padding=1, bn=True)
    N, Cin, H, W = 2, 4, 16, 16
    Cout, KH, KW = 8, 3, 3

    key = jax.random.PRNGKey(0)
    kx, kw = jax.random.split(key)
    x = jax.random.normal(kx, (N, Cin, H, W), dtype=jnp.float32)
    weight = 0.1 * jax.random.normal(kw, (Cout, Cin, KH, KW), dtype=jnp.float32)
    gamma = jnp.ones((Cout,), jnp.float32)   # BatchNorm2d default init
    beta = jnp.zeros((Cout,), jnp.float32)

    # bn=True path
    out = conv_bn(x, weight, gamma, beta, stride=1, padding=1, bn=True)
    out = jax.block_until_ready(out)
    ref = _reference(x, weight, gamma, beta, padding=1, bn=True)
    if not jnp.allclose(out, ref, atol=1e-3, rtol=1e-3):
        raise AssertionError(
            f"bn=True mismatch: max abs err = {jnp.max(jnp.abs(out - ref))}")

    # bn=False path (conv only)
    out_nb = conv_bn(x, weight, gamma, beta, stride=1, padding=1, bn=False)
    out_nb = jax.block_until_ready(out_nb)
    ref_nb = _reference(x, weight, gamma, beta, padding=1, bn=False)
    if not jnp.allclose(out_nb, ref_nb, atol=1e-3, rtol=1e-3):
        raise AssertionError(
            f"bn=False mismatch: max abs err = {jnp.max(jnp.abs(out_nb - ref_nb))}")

    print("KERNEL_OK")
</pallas_src>

<mosaic_0001>
module attributes {stable_mosaic.version = 11 : i64} {
  func.func @conv_bn_fused_kernel(%arg0: i32, %arg1: memref<4x896xf32, #tpu.memory_space<vmem>>, %arg2: memref<8x72xf32, #tpu.memory_space<vmem>>, %arg3: memref<1x768xf32, #tpu.memory_space<vmem>>, %arg4: memref<8x1xf32, #tpu.memory_space<vmem>>, %arg5: memref<8x1xf32, #tpu.memory_space<vmem>>, %arg6: memref<8x768xf32, #tpu.memory_space<vmem>>, %arg7: memref<72x768xf32, #tpu.memory_space<vmem>>) attributes {dimension_semantics = [#tpu.dimension_semantics<arbitrary>], iteration_bounds = array<i64: 1>, scalar_prefetch = 0 : i64, scratch_operands = 1 : i64, tpu.core_type = #tpu.core_type<tc>, window_params = [{pipeline_mode = #tpu.pipeline_mode<synchronous>, transform_indices = @transform_0, window_bounds = array<i64: 4, 896>}, {pipeline_mode = #tpu.pipeline_mode<synchronous>, transform_indices = @transform_1, window_bounds = array<i64: 8, 72>}, {pipeline_mode = #tpu.pipeline_mode<synchronous>, transform_indices = @transform_2, window_bounds = array<i64: 1, 768>}, {pipeline_mode = #tpu.pipeline_mode<synchronous>, transform_indices = @transform_3, window_bounds = array<i64: 8, 1>}, {pipeline_mode = #tpu.pipeline_mode<synchronous>, transform_indices = @transform_4, window_bounds = array<i64: 8, 1>}, {pipeline_mode = #tpu.pipeline_mode<synchronous>, transform_indices = @transform_5, window_bounds = array<i64: 8, 768>}]} {
    %c0 = arith.constant 0 : index
    %c0_0 = arith.constant 0 : index
    %0 = vector.load %arg1[%c0, %c0_0] : memref<4x896xf32, #tpu.memory_space<vmem>>, vector<4x896xf32>
    %cst = arith.constant 0.000000e+00 : f32
    %1 = vector.broadcast %cst : f32 to vector<72x768xf32>
    %c0_1 = arith.constant 0 : index
    %c0_2 = arith.constant 0 : index
    %2 = vector.load %arg7[%c0_1, %c0_2] : memref<72x768xf32, #tpu.memory_space<vmem>>, vector<72x768xf32>
    tpu.vector_store %arg7[%c0_1, %c0_2], %1 {strides = array<i32>} : memref<72x768xf32, #tpu.memory_space<vmem>>, vector<72x768xf32>,
    %3 = vector.extract_strided_slice %0 {offsets = [0, 0], sizes = [4, 768], strides = [1, 1]} : vector<4x896xf32> to vector<4x768xf32>
    %c0_3 = arith.constant 0 : index
    %c0_4 = arith.constant 0 : index
    %4 = vector.load %arg7[%c0_3, %c0_4] : memref<72x768xf32, #tpu.memory_space<vmem>>, vector<4x768xf32>
    tpu.vector_store %arg7[%c0_3, %c0_4], %3 {strides = array<i32>} : memref<72x768xf32, #tpu.memory_space<vmem>>, vector<4x768xf32>,
    %5 = vector.extract_strided_slice %0 {offsets = [0, 1], sizes = [4, 768], strides = [1, 1]} : vector<4x896xf32> to vector<4x768xf32>
    %c8 = arith.constant 8 : index
    %c0_5 = arith.constant 0 : index
    %6 = vector.load %arg7[%c8, %c0_5] : memref<72x768xf32, #tpu.memory_space<vmem>>, vector<4x768xf32>
    tpu.vector_store %arg7[%c8, %c0_5], %5 {strides = array<i32>} : memref<72x768xf32, #tpu.memory_space<vmem>>, vector<4x768xf32>,
    %7 = vector.extract_strided_slice %0 {offsets = [0, 2], sizes = [4, 768], strides = [1, 1]} : vector<4x896xf32> to vector<4x768xf32>
    %c16 = arith.constant 16 : index
    %c0_6 = arith.constant 0 : index
    %8 = vector.load %arg7[%c16, %c0_6] : memref<72x768xf32, #tpu.memory_space<vmem>>, vector<4x768xf32>
    tpu.vector_store %arg7[%c16, %c0_6], %7 {strides = array<i32>} : memref<72x768xf32, #tpu.memory_space<vmem>>, vector<4x768xf32>,
    %9 = vector.extract_strided_slice %0 {offsets = [0, 18], sizes = [4, 768], strides = [1, 1]} : vector<4x896xf32> to vector<4x768xf32>
    %c24 = arith.constant 24 : index
    %c0_7 = arith.constant 0 : index
    %10 = vector.load %arg7[%c24, %c0_7] : memref<72x768xf32, #tpu.memory_space<vmem>>, vector<4x768xf32>
    tpu.vector_store %arg7[%c24, %c0_7], %9 {strides = array<i32>} : memref<72x768xf32, #tpu.memory_space<vmem>>, vector<4x768xf32>,
    %11 = vector.extract_strided_slice %0 {offsets = [0, 19], sizes = [4, 768], strides = [1, 1]} : vector<4x896xf32> to vector<4x768xf32>
    %c32 = arith.constant 32 : index
    %c0_8 = arith.constant 0 : index
    %12 = vector.load %arg7[%c32, %c0_8] : memref<72x768xf32, #tpu.memory_space<vmem>>, vector<4x768xf32>
    tpu.vector_store %arg7[%c32, %c0_8], %11 {strides = array<i32>} : memref<72x768xf32, #tpu.memory_space<vmem>>, vector<4x768xf32>,
    %13 = vector.extract_strided_slice %0 {offsets = [0, 20], sizes = [4, 768], strides = [1, 1]} : vector<4x896xf32> to vector<4x768xf32>
    %c40 = arith.constant 40 : index
    %c0_9 = arith.constant 0 : index
    %14 = vector.load %arg7[%c40, %c0_9] : memref<72x768xf32, #tpu.memory_space<vmem>>, vector<4x768xf32>
    tpu.vector_store %arg7[%c40, %c0_9], %13 {strides = array<i32>} : memref<72x768xf32, #tpu.memory_space<vmem>>, vector<4x768xf32>,
    %15 = vector.extract_strided_slice %0 {offsets = [0, 36], sizes = [4, 768], strides = [1, 1]} : vector<4x896xf32> to vector<4x768xf32>
    %c48 = arith.constant 48 : index
    %c0_10 = arith.constant 0 : index
    %16 = vector.load %arg7[%c48, %c0_10] : memref<72x768xf32, #tpu.memory_space<vmem>>, vector<4x768xf32>
    tpu.vector_store %arg7[%c48, %c0_10], %15 {strides = array<i32>} : memref<72x768xf32, #tpu.memory_space<vmem>>, vector<4x768xf32>,
    %17 = vector.extract_strided_slice %0 {offsets = [0, 37], sizes = [4, 768], strides = [1, 1]} : vector<4x896xf32> to vector<4x768xf32>
    %c56 = arith.constant 56 : index
    %c0_11 = arith.constant 0 : index
    %18 = vector.load %arg7[%c56, %c0_11] : memref<72x768xf32, #tpu.memory_space<vmem>>, vector<4x768xf32>
    tpu.vector_store %arg7[%c56, %c0_11], %17 {strides = array<i32>} : memref<72x768xf32, #tpu.memory_space<vmem>>, vector<4x768xf32>,
    %19 = vector.extract_strided_slice %0 {offsets = [0, 38], sizes = [4, 768], strides = [1, 1]} : vector<4x896xf32> to vector<4x768xf32>
    %c64 = arith.constant 64 : index
    %c0_12 = arith.constant 0 : index
    %20 = vector.load %arg7[%c64, %c0_12] : memref<72x768xf32, #tpu.memory_space<vmem>>, vector<4x768xf32>
    tpu.vector_store %arg7[%c64, %c0_12], %19 {strides = array<i32>} : memref<72x768xf32, #tpu.memory_space<vmem>>, vector<4x768xf32>,
    %c0_13 = arith.constant 0 : index
    %c0_14 = arith.constant 0 : index
    %21 = vector.load %arg2[%c0_13, %c0_14] : memref<8x72xf32, #tpu.memory_space<vmem>>, vector<8x72xf32>
    %c0_15 = arith.constant 0 : index
    %c0_16 = arith.constant 0 : index
    %22 = vector.load %arg7[%c0_15, %c0_16] : memref<72x768xf32, #tpu.memory_space<vmem>>, vector<72x768xf32>
    %cst_17 = arith.constant dense<0.000000e+00> : vector<8x768xf32>
    %23 = tpu.matmul %21, %22, %cst_17 {dimension_numbers = #tpu.dot_dimension_numbers<[1], [0], [0], [1], [0, 0, 1, 1], [], []>} : vector<8x72xf32>, vector<72x768xf32>, vector<8x768xf32> -> vector<8x768xf32>
    %c0_18 = arith.constant 0 : index
    %c0_19 = arith.constant 0 : index
    %24 = vector.load %arg3[%c0_18, %c0_19] : memref<1x768xf32, #tpu.memory_space<vmem>>, vector<1x768xf32>
    %25 = vector.broadcast %24 : vector<1x768xf32> to vector<8x768xf32>
    %26 = arith.mulf %23, %25 : vector<8x768xf32>
    %cst_20 = arith.constant dense<0.000000e+00> : vector<8xf32>
    %27 = vector.multi_reduction <add>, %26, %cst_20 [1] : vector<8x768xf32> to vector<8xf32>
    %28 = vector.shape_cast %27 : vector<8xf32> to vector<8x1xf32>
    %29 = arith.mulf %23, %23 : vector<8x768xf32>
    %30 = vector.broadcast %24 : vector<1x768xf32> to vector<8x768xf32>
    %31 = arith.mulf %29, %30 : vector<8x768xf32>
    %cst_21 = arith.constant dense<0.000000e+00> : vector<8xf32>
    %32 = vector.multi_reduction <add>, %31, %cst_21 [1] : vector<8x768xf32> to vector<8xf32>
    %33 = vector.shape_cast %32 : vector<8xf32> to vector<8x1xf32>
    %cst_22 = arith.constant 0.001953125 : f32
    %34 = vector.broadcast %cst_22 : f32 to vector<8x1xf32>
    %35 = arith.mulf %28, %34 : vector<8x1xf32>
    %cst_23 = arith.constant 0.001953125 : f32
    %36 = vector.broadcast %cst_23 : f32 to vector<8x1xf32>
    %37 = arith.mulf %33, %36 : vector<8x1xf32>
    %38 = arith.mulf %35, %35 : vector<8x1xf32>
    %39 = arith.subf %37, %38 : vector<8x1xf32>
    %cst_24 = arith.constant 9.99999974E-6 : f32
    %40 = vector.broadcast %cst_24 : f32 to vector<8x1xf32>
    %41 = arith.addf %39, %40 : vector<8x1xf32>
    %42 = math.rsqrt %41 : vector<8x1xf32>
    %c0_25 = arith.constant 0 : index
    %c0_26 = arith.constant 0 : index
    %43 = vector.load %arg4[%c0_25, %c0_26] : memref<8x1xf32, #tpu.memory_space<vmem>>, vector<8x1xf32>
    %44 = arith.mulf %43, %42 : vector<8x1xf32>
    %c0_27 = arith.constant 0 : index
    %c0_28 = arith.constant 0 : index
    %45 = vector.load %arg5[%c0_27, %c0_28] : memref<8x1xf32, #tpu.memory_space<vmem>>, vector<8x1xf32>
    %46 = arith.mulf %35, %44 : vector<8x1xf32>
    %47 = arith.subf %45, %46 : vector<8x1xf32>
    %48 = vector.broadcast %44 : vector<8x1xf32> to vector<8x768xf32>
    %49 = arith.mulf %23, %48 : vector<8x768xf32>
    %50 = vector.broadcast %47 : vector<8x1xf32> to vector<8x768xf32>
    %51 = arith.addf %49, %50 : vector<8x768xf32>
    %c0_29 = arith.constant 0 : index
    %c0_30 = arith.constant 0 : index
    %52 = vector.load %arg6[%c0_29, %c0_30] : memref<8x768xf32, #tpu.memory_space<vmem>>, vector<8x768xf32>
    tpu.vector_store %arg6[%c0_29, %c0_30], %51 {strides = array<i32>} : memref<8x768xf32, #tpu.memory_space<vmem>>, vector<8x768xf32>,
    return
  }
  func.func @transform_0(%arg0: i32) -> (i32, i32) {
    %c0_i32 = arith.constant 0 : i32
    %c0_i32_0 = arith.constant 0 : i32
    %c0_i32_1 = arith.constant 0 : i32
    return %c0_i32, %c0_i32_0 : i32, i32
  }
  func.func @transform_1(%arg0: i32) -> (i32, i32) {
    %c0_i32 = arith.constant 0 : i32
    %c0_i32_0 = arith.constant 0 : i32
    %c0_i32_1 = arith.constant 0 : i32
    return %c0_i32, %c0_i32_0 : i32, i32
  }
  func.func @transform_2(%arg0: i32) -> (i32, i32) {
    %c0_i32 = arith.constant 0 : i32
    %c0_i32_0 = arith.constant 0 : i32
    %c0_i32_1 = arith.constant 0 : i32
    return %c0_i32, %c0_i32_0 : i32, i32
  }
  func.func @transform_3(%arg0: i32) -> (i32, i32) {
    %c0_i32 = arith.constant 0 : i32
    %c0_i32_0 = arith.constant 0 : i32
    %c0_i32_1 = arith.constant 0 : i32
    return %c0_i32, %c0_i32_0 : i32, i32
  }
  func.func @transform_4(%arg0: i32) -> (i32, i32) {
    %c0_i32 = arith.constant 0 : i32
    %c0_i32_0 = arith.constant 0 : i32
    %c0_i32_1 = arith.constant 0 : i32
    return %c0_i32, %c0_i32_0 : i32, i32
  }
  func.func @transform_5(%arg0: i32) -> (i32, i32) {
    %c0_i32 = arith.constant 0 : i32
    %c0_i32_0 = arith.constant 0 : i32
    %c0_i32_1 = arith.constant 0 : i32
    return %c0_i32, %c0_i32_0 : i32, i32
  }
}

</mosaic_0001>

<llo_original>
// kernel: tpu_custom_call.1
$region0: #{tpu_custom_call.1}
  #allocation0 [shape = 'u32[]', space=smem, size = 0x4, offset = 0x4, fixed_abs, tag = 'smem constant byte address 0x4 - core index']
  #allocation1 [shape = 'u32[72,128]{1,0:T(1,128)}', space=vmem, size = 0x9000, scoped, tag = 'internal scratch']
  #allocation2 [shape = 'f32[72,768]{1,0:T(8,128)}', space=vmem, size = 0x36000, scoped, tag = 'scratch operand']
  %s0 = inlined_call_operand.hbm [shape: f32[4,896], index: 0, kind: input, shape index: {}]
  %s1 = inlined_call_operand.vmem [shape: f32[8,72], index: 1, kind: input, shape index: {}]
  %s2 = inlined_call_operand.vmem [shape: f32[1,768], index: 2, kind: input, shape index: {}]
  %s3 = inlined_call_operand.vmem [shape: f32[8,1], index: 3, kind: input, shape index: {}]
  %s4 = inlined_call_operand.vmem [shape: f32[8,1], index: 4, kind: input, shape index: {}]
  %s5 = inlined_call_operand.hbm [shape: f32[8,768], index: 5, kind: output, shape index: {}]
  %s6 = sld [smem:[#allocation0]]
  $region34: #{tpu_custom_call.1} parent=0
    _
  %s8 = ssub.s32 1, %s6
  %s9 = scalar_select 0, %s8, %s6
  $region1: #{tpu_custom_call.1} parent=0
    #allocation3 [shape = 'u8[14336]{0}', space=vmem, size = 0x3800, scoped, tag = 'input window, operand 0, single buffered']
    #allocation4 [shape = 's32[1]{0}', space=sflag, size = 0x4, scoped, tag = 'scoped memory for tpu_custom_call.1']
    #allocation5 [shape = 's32[1]{0}', space=sflag, size = 0x4, scoped, tag = 'scoped memory for tpu_custom_call.1']
    #allocation6 [shape = 'u8[24576]{0}', space=vmem, size = 0x6000, scoped, tag = 'output window, operand 0, single buffered']
    %10 = vsyncpa [#allocation4], 0
    %11 = vsyncpa [#allocation5], 0
    // Predicated region
    $region2: #{tpu_custom_call.1} parent=1 // pred_check
      _
    $region3: #{tpu_custom_call.1} parent=1 // pred_check_branch
      %13 = sbr.rel (0) target = $region5
    $region4: #{tpu_custom_call.1} parent=1 // pred_region
      %15 = vsyncadd [#allocation4], 0
      %s17 = sshll.u32 %s0, 4
      %s18 = int_to_ptr.hbm [resolvable:$true] %s17
      %s19 = sshll.u32 [#allocation3], 4
      %s20 = int_to_ptr.vmem [resolvable:$true] %s19
      %22 = dma.hbm_to_vmem [thread:$0]  %s18, 448, %s20, [#allocation4]
    $region5: #{tpu_custom_call.1} parent=1 // pred_fallthru
      _
    // Predicated region
    $region6: #{tpu_custom_call.1} parent=1 // pred_check
      _
    $region7: #{tpu_custom_call.1} parent=1 // pred_check_branch
      %24 = sbr.rel (0) target = $region9
    $region8: #{tpu_custom_call.1} parent=1 // pred_region
      _
    $region9: #{tpu_custom_call.1} parent=1 // pred_fallthru
      _
    // Predicated region
    $region10: #{tpu_custom_call.1} parent=1 // pred_check
      _
    $region11: #{tpu_custom_call.1} parent=1 // pred_check_branch
      %26 = sbr.rel (0) target = $region13
    $region12: #{tpu_custom_call.1} parent=1 // pred_region
      _
    $region13: #{tpu_custom_call.1} parent=1 // pred_fallthru
      _
    // Predicated region
    $region14: #{tpu_custom_call.1} parent=1 // pred_check
      _
    $region15: #{tpu_custom_call.1} parent=1 // pred_check_branch
      %28 = sbr.rel (0) target = $region17
    $region16: #{tpu_custom_call.1} parent=1 // pred_region
      _
    $region17: #{tpu_custom_call.1} parent=1 // pred_fallthru
      _
    // Predicated region
    $region18: #{tpu_custom_call.1} parent=1 // pred_check
      _
    $region19: #{tpu_custom_call.1} parent=1 // pred_check_branch
      %30 = sbr.rel (0) target = $region21
    $region20: #{tpu_custom_call.1} parent=1 // pred_region
      _
    $region21: #{tpu_custom_call.1} parent=1 // pred_fallthru
      _
    // Predicated region
    $region22: #{tpu_custom_call.1} parent=1 // pred_check
      _
    $region23: #{tpu_custom_call.1} parent=1 // pred_check_branch
      %32 = sbr.rel (0) target = $region25
    $region24: #{tpu_custom_call.1} parent=1 // pred_region
      %34 = dma.done [#allocation4], 448
    $region25: #{tpu_custom_call.1} parent=1 // pred_fallthru
      _
    %v35 = vld [vmem:[#allocation3] sm:$0xff]
    %v36 = vld [vmem:[#allocation3 + $0x8] sm:$0xff]
    %v37 = vld [vmem:[#allocation3 + $0x10] sm:$0xff]
    %v38 = vld [vmem:[#allocation3 + $0x18] sm:$0xf]
    %39 = vst [vmem:[#allocation2] sm:$0xff] 0.0
    %40 = vst [vmem:[#allocation2 + $0x8] sm:$0xff] 0.0
    %41 = vst [vmem:[#allocation2 + $0x10] sm:$0xff] 0.0
    %42 = vst [vmem:[#allocation2 + $0x18] sm:$0xff] 0.0
    %43 = vst [vmem:[#allocation2 + $0x20] sm:$0xff] 0.0
    %44 = vst [vmem:[#allocation2 + $0x28] sm:$0xff] 0.0
    %45 = vst [vmem:[#allocation2 + $0x30] sm:$0xff] 0.0
    %46 = vst [vmem:[#allocation2 + $0x38] sm:$0xff] 0.0
    %47 = vst [vmem:[#allocation2 + $0x40] sm:$0xff] 0.0
    %48 = vst [vmem:[#allocation2 + $0x48] sm:$0xff] 0.0
    %49 = vst [vmem:[#allocation2 + $0x50] sm:$0xff] 0.0
    %50 = vst [vmem:[#allocation2 + $0x58] sm:$0xff] 0.0
    %51 = vst [vmem:[#allocation2 + $0x60] sm:$0xff] 0.0
    %52 = vst [vmem:[#allocation2 + $0x68] sm:$0xff] 0.0
    %53 = vst [vmem:[#allocation2 + $0x70] sm:$0xff] 0.0
    %54 = vst [vmem:[#allocation2 + $0x78] sm:$0xff] 0.0
    %55 = vst [vmem:[#allocation2 + $0x80] sm:$0xff] 0.0
    %56 = vst [vmem:[#allocation2 + $0x88] sm:$0xff] 0.0
    %57 = vst [vmem:[#allocation2 + $0x90] sm:$0xff] 0.0
    %58 = vst [vmem:[#allocation2 + $0x98] sm:$0xff] 0.0
    %59 = vst [vmem:[#allocation2 + $0xa0] sm:$0xff] 0.0
    %60 = vst [vmem:[#allocation2 + $0xa8] sm:$0xff] 0.0
    %61 = vst [vmem:[#allocation2 + $0xb0] sm:$0xff] 0.0
    %62 = vst [vmem:[#allocation2 + $0xb8] sm:$0xff] 0.0
    %63 = vst [vmem:[#allocation2 + $0xc0] sm:$0xff] 0.0
    %64 = vst [vmem:[#allocation2 + $0xc8] sm:$0xff] 0.0
    %65 = vst [vmem:[#allocation2 + $0xd0] sm:$0xff] 0.0
    %66 = vst [vmem:[#allocation2 + $0xd8] sm:$0xff] 0.0
    %67 = vst [vmem:[#allocation2 + $0xe0] sm:$0xff] 0.0
    %68 = vst [vmem:[#allocation2 + $0xe8] sm:$0xff] 0.0
    %69 = vst [vmem:[#allocation2 + $0xf0] sm:$0xff] 0.0
    %70 = vst [vmem:[#allocation2 + $0xf8] sm:$0xff] 0.0
    %71 = vst [vmem:[#allocation2 + $0x100] sm:$0xff] 0.0
    %72 = vst [vmem:[#allocation2 + $0x108] sm:$0xff] 0.0
    %73 = vst [vmem:[#allocation2 + $0x110] sm:$0xff] 0.0
    %74 = vst [vmem:[#allocation2 + $0x118] sm:$0xff] 0.0
    %75 = vst [vmem:[#allocation2 + $0x120] sm:$0xff] 0.0
    %76 = vst [vmem:[#allocation2 + $0x128] sm:$0xff] 0.0
    %77 = vst [vmem:[#allocation2 + $0x130] sm:$0xff] 0.0
    %78 = vst [vmem:[#allocation2 + $0x138] sm:$0xff] 0.0
    %79 = vst [vmem:[#allocation2 + $0x140] sm:$0xff] 0.0
    %80 = vst [vmem:[#allocation2 + $0x148] sm:$0xff] 0.0
    %81 = vst [vmem:[#allocation2 + $0x150] sm:$0xff] 0.0
    %82 = vst [vmem:[#allocation2 + $0x158] sm:$0xff] 0.0
    %83 = vst [vmem:[#allocation2 + $0x160] sm:$0xff] 0.0
    %84 = vst [vmem:[#allocation2 + $0x168] sm:$0xff] 0.0
    %85 = vst [vmem:[#allocation2 + $0x170] sm:$0xff] 0.0
    %86 = vst [vmem:[#allocation2 + $0x178] sm:$0xff] 0.0
    %87 = vst [vmem:[#allocation2 + $0x180] sm:$0xff] 0.0
    %88 = vst [vmem:[#allocation2 + $0x188] sm:$0xff] 0.0
    %89 = vst [vmem:[#allocation2 + $0x190] sm:$0xff] 0.0
    %90 = vst [vmem:[#allocation2 + $0x198] sm:$0xff] 0.0
    %91 = vst [vmem:[#allocation2 + $0x1a0] sm:$0xff] 0.0
    %92 = vst [vmem:[#allocation2 + $0x1a8] sm:$0xff] 0.0
    %96 = vst [vmem:[#allocation1] ss:$2 sm:$0xff] %v35
    %s97 = scalar_lea.vmem [#allocation1], 16
    %98 = vst [vmem:[%s97] ss:$2 sm:$0xff] %v36
    %s99 = scalar_lea.vmem [#allocation1], 32
    %100 = vst [vmem:[%s99] ss:$2 sm:$0xff] %v37
    %v101 = vld.sshfl [vmem:[#allocation1] sm:$0xff pattern:$0x75316420]
    %v102 = vld.sshfl [vmem:[#allocation1 + $0x8] sm:$0xff pattern:$0x75316420]
    %v103 = vld.sshfl [vmem:[#allocation1 + $0x10] sm:$0xff pattern:$0x75316420]
    %v104 = vld.sshfl [vmem:[#allocation1 + $0x18] sm:$0xff pattern:$0x75316420]
    %v105 = vld.sshfl [vmem:[#allocation1 + $0x20] sm:$0xff pattern:$0x75316420]
    %v106 = vld.sshfl [vmem:[#allocation1 + $0x28] sm:$0xff pattern:$0x75316420]
    %113 = vst [vmem:[#allocation2] sm:$0xf] %v101
    %114 = vst [vmem:[#allocation2 + $0x8] sm:$0xf] %v102
    %115 = vst [vmem:[#allocation2 + $0x10] sm:$0xf] %v103
    %116 = vst [vmem:[#allocation2 + $0x18] sm:$0xf] %v104
    %117 = vst [vmem:[#allocation2 + $0x20] sm:$0xf] %v105
    %118 = vst [vmem:[#allocation2 + $0x28] sm:$0xf] %v106
    %120 = vst [vmem:[#allocation1] ss:$2 sm:$0xff] %v35
    %s121 = scalar_lea.vmem [#allocation1], 16
    %122 = vst [vmem:[%s121] ss:$2 sm:$0xff] %v36
    %s123 = scalar_lea.vmem [#allocation1], 32
    %124 = vst [vmem:[%s123] ss:$2 sm:$0xff] %v37
    %s125 = scalar_lea.vmem [#allocation1], 48
    %126 = vst [vmem:[%s125] ss:$2 sm:$0xff] %v38
    %v127 = vld.sshfl [vmem:[#allocation1] sm:$0xff pattern:$0x75316420]
    %v128 = vld.sshfl [vmem:[#allocation1 + $0x8] sm:$0xff pattern:$0x75316420]
    %v129 = vld.sshfl [vmem:[#allocation1 + $0x10] sm:$0xff pattern:$0x75316420]
    %v130 = vld.sshfl [vmem:[#allocation1 + $0x18] sm:$0xff pattern:$0x75316420]
    %v131 = vld.sshfl [vmem:[#allocation1 + $0x20] sm:$0xff pattern:$0x75316420]
    %v132 = vld.sshfl [vmem:[#allocation1 + $0x28] sm:$0xff pattern:$0x75316420]
    %v133 = vld.sshfl [vmem:[#allocation1 + $0x30] sm:$0xff pattern:$0x75316420]
    %134 = vrot.lane.b32.xlu0 %v127, 127
    %v135 = vpop.permute.xlu0 %134
    %136 = vrot.lane.b32.xlu0 %v128, 127
    %v137 = vpop.permute.xlu0 %136
    %138 = vrot.lane.b32.xlu0 %v129, 127
    %v139 = vpop.permute.xlu0 %138
    %140 = vrot.lane.b32.xlu0 %v130, 127
    %v141 = vpop.permute.xlu0 %140
    %142 = vrot.lane.b32.xlu0 %v131, 127
    %v143 = vpop.permute.xlu0 %142
    %144 = vrot.lane.b32.xlu0 %v132, 127
    %v145 = vpop.permute.xlu0 %144
    %146 = vrot.lane.b32.xlu0 %v133, 127
    %v147 = vpop.permute.xlu0 %146
    %vm148 = vcmask 1039360
    %v149 = vsel %vm148, %v135, %v137
    %v150 = vsel %vm148, %v137, %v139
    %v151 = vsel %vm148, %v139, %v141
    %v152 = vsel %vm148, %v141, %v143
    %v153 = vsel %vm148, %v143, %v145
    %v154 = vsel %vm148, %v145, %v147
    %161 = vst [vmem:[#allocation2 + $0x30] sm:$0xf] %v149
    %162 = vst [vmem:[#allocation2 + $0x38] sm:$0xf] %v150
    %163 = vst [vmem:[#allocation2 + $0x40] sm:$0xf] %v151
    %164 = vst [vmem:[#allocation2 + $0x48] sm:$0xf] %v152
    %165 = vst [vmem:[#allocation2 + $0x50] sm:$0xf] %v153
    %166 = vst [vmem:[#allocation2 + $0x58] sm:$0xf] %v154
    %167 = vst [vmem:[#allocation1] ss:$2 sm:$0xff] %v35
    %s168 = scalar_lea.vmem [#allocation1], 16
    %169 = vst [vmem:[%s168] ss:$2 sm:$0xff] %v36
    %s170 = scalar_lea.vmem [#allocation1], 32
    %171 = vst [vmem:[%s170] ss:$2 sm:$0xff] %v37
    %s172 = scalar_lea.vmem [#allocation1], 48
    %173 = vst [vmem:[%s172] ss:$2 sm:$0xff] %v38
    %v174 = vld.sshfl [vmem:[#allocation1] sm:$0xff pattern:$0x75316420]
    %v175 = vld.sshfl [vmem:[#allocation1 + $0x8] sm:$0xff pattern:$0x75316420]
    %v176 = vld.sshfl [vmem:[#allocation1 + $0x10] sm:$0xff pattern:$0x75316420]
    %v177 = vld.sshfl [vmem:[#allocation1 + $0x18] sm:$0xff pattern:$0x75316420]
    %v178 = vld.sshfl [vmem:[#allocation1 + $0x20] sm:$0xff pattern:$0x75316420]
    %v179 = vld.sshfl [vmem:[#allocation1 + $0x28] sm:$0xff pattern:$0x75316420]
    %v180 = vld.sshfl [vmem:[#allocation1 + $0x30] sm:$0xff pattern:$0x75316420]
    %181 = vrot.lane.b32.xlu0 %v174, 126
    %v182 = vpop.permute.xlu0 %181
    %183 = vrot.lane.b32.xlu0 %v175, 126
    %v184 = vpop.permute.xlu0 %183
    %185 = vrot.lane.b32.xlu0 %v176, 126
    %v186 = vpop.permute.xlu0 %185
    %187 = vrot.lane.b32.xlu0 %v177, 126
    %v188 = vpop.permute.xlu0 %187
    %189 = vrot.lane.b32.xlu0 %v178, 126
    %v190 = vpop.permute.xlu0 %189
    %191 = vrot.lane.b32.xlu0 %v179, 126
    %v192 = vpop.permute.xlu0 %191
    %193 = vrot.lane.b32.xlu0 %v180, 126
    %v194 = vpop.permute.xlu0 %193
    %vm195 = vcmask 1031168
    %v196 = vsel %vm195, %v182, %v184
    %v197 = vsel %vm195, %v184, %v186
    %v198 = vsel %vm195, %v186, %v188
    %v199 = vsel %vm195, %v188, %v190
    %v200 = vsel %vm195, %v190, %v192
    %v201 = vsel %vm195, %v192, %v194
    %208 = vst [vmem:[#allocation2 + $0x60] sm:$0xf] %v196
    %209 = vst [vmem:[#allocation2 + $0x68] sm:$0xf] %v197
    %210 = vst [vmem:[#allocation2 + $0x70] sm:$0xf] %v198
    %211 = vst [vmem:[#allocation2 + $0x78] sm:$0xf] %v199
    %212 = vst [vmem:[#allocation2 + $0x80] sm:$0xf] %v200
    %213 = vst [vmem:[#allocation2 + $0x88] sm:$0xf] %v201
    %214 = vst [vmem:[#allocation1] ss:$2 sm:$0xff] %v35
    %s215 = scalar_lea.vmem [#allocation1], 16
    %216 = vst [vmem:[%s215] ss:$2 sm:$0xff] %v36
    %s217 = scalar_lea.vmem [#allocation1], 32
    %218 = vst [vmem:[%s217] ss:$2 sm:$0xff] %v37
    %s219 = scalar_lea.vmem [#allocation1], 48
    %220 = vst [vmem:[%s219] ss:$2 sm:$0xff] %v38
    %v221 = vld.sshfl [vmem:[#allocation1] sm:$0xff pattern:$0x75316420]
    %v222 = vld.sshfl [vmem:[#allocation1 + $0x8] sm:$0xff pattern:$0x75316420]
    %v223 = vld.sshfl [vmem:[#allocation1 + $0x10] sm:$0xff pattern:$0x75316420]
    %v224 = vld.sshfl [vmem:[#allocation1 + $0x18] sm:$0xff pattern:$0x75316420]
    %v225 = vld.sshfl [vmem:[#allocation1 + $0x20] sm:$0xff pattern:$0x75316420]
    %v226 = vld.sshfl [vmem:[#allocation1 + $0x28] sm:$0xff pattern:$0x75316420]
    %v227 = vld.sshfl [vmem:[#allocation1 + $0x30] sm:$0xff pattern:$0x75316420]
    %228 = vrot.lane.b32.xlu0 %v221, 110
    %v229 = vpop.permute.xlu0 %228
    %230 = vrot.lane.b32.xlu0 %v222, 110
    %v231 = vpop.permute.xlu0 %230
    %232 = vrot.lane.b32.xlu0 %v223, 110
    %v233 = vpop.permute.xlu0 %232
    %234 = vrot.lane.b32.xlu0 %v224, 110
    %v235 = vpop.permute.xlu0 %234
    %236 = vrot.lane.b32.xlu0 %v225, 110
    %v237 = vpop.permute.xlu0 %236
    %238 = vrot.lane.b32.xlu0 %v226, 110
    %v239 = vpop.permute.xlu0 %238
    %240 = vrot.lane.b32.xlu0 %v227, 110
    %v241 = vpop.permute.xlu0 %240
    %vm242 = vcmask 900096
    %v243 = vsel %vm242, %v229, %v231
    %v244 = vsel %vm242, %v231, %v233
    %v245 = vsel %vm242, %v233, %v235
    %v246 = vsel %vm242, %v235, %v237
    %v247 = vsel %vm242, %v237, %v239
    %v248 = vsel %vm242, %v239, %v241
    %255 = vst [vmem:[#allocation2 + $0x90] sm:$0xf] %v243
    %256 = vst [vmem:[#allocation2 + $0x98] sm:$0xf] %v244
    %257 = vst [vmem:[#allocation2 + $0xa0] sm:$0xf] %v245
    %258 = vst [vmem:[#allocation2 + $0xa8] sm:$0xf] %v246
    %259 = vst [vmem:[#allocation2 + $0xb0] sm:$0xf] %v247
    %260 = vst [vmem:[#allocation2 + $0xb8] sm:$0xf] %v248
    %261 = vst [vmem:[#allocation1] ss:$2 sm:$0xff] %v35
    %s262 = scalar_lea.vmem [#allocation1], 16
    %263 = vst [vmem:[%s262] ss:$2 sm:$0xff] %v36
    %s264 = scalar_lea.vmem [#allocation1], 32
    %265 = vst [vmem:[%s264] ss:$2 sm:$0xff] %v37
    %s266 = scalar_lea.vmem [#allocation1], 48
    %267 = vst [vmem:[%s266] ss:$2 sm:$0xff] %v38
    %v268 = vld.sshfl [vmem:[#allocation1] sm:$0xff pattern:$0x75316420]
    %v269 = vld.sshfl [vmem:[#allocation1 + $0x8] sm:$0xff pattern:$0x75316420]
    %v270 = vld.sshfl [vmem:[#allocation1 + $0x10] sm:$0xff pattern:$0x75316420]
    %v271 = vld.sshfl [vmem:[#allocation1 + $0x18] sm:$0xff pattern:$0x75316420]
    %v272 = vld.sshfl [vmem:[#allocation1 + $0x20] sm:$0xff pattern:$0x75316420]
    %v273 = vld.sshfl [vmem:[#allocation1 + $0x28] sm:$0xff pattern:$0x75316420]
    %v274 = vld.sshfl [vmem:[#allocation1 + $0x30] sm:$0xff pattern:$0x75316420]
    %275 = vrot.lane.b32.xlu0 %v268, 109
    %v276 = vpop.permute.xlu0 %275
    %277 = vrot.lane.b32.xlu0 %v269, 109
    %v278 = vpop.permute.xlu0 %277
    %279 = vrot.lane.b32.xlu0 %v270, 109
    %v280 = vpop.permute.xlu0 %279
    %281 = vrot.lane.b32.xlu0 %v271, 109
    %v282 = vpop.permute.xlu0 %281
    %283 = vrot.lane.b32.xlu0 %v272, 109
    %v284 = vpop.permute.xlu0 %283
    %285 = vrot.lane.b32.xlu0 %v273, 109
    %v286 = vpop.permute.xlu0 %285
    %287 = vrot.lane.b32.xlu0 %v274, 109
    %v288 = vpop.permute.xlu0 %287
    %vm289 = vcmask 891904
    %v290 = vsel %vm289, %v276, %v278
    %v291 = vsel %vm289, %v278, %v280
    %v292 = vsel %vm289, %v280, %v282
    %v293 = vsel %vm289, %v282, %v284
    %v294 = vsel %vm289, %v284, %v286
    %v295 = vsel %vm289, %v286, %v288
    %302 = vst [vmem:[#allocation2 + $0xc0] sm:$0xf] %v290
    %303 = vst [vmem:[#allocation2 + $0xc8] sm:$0xf] %v291
    %304 = vst [vmem:[#allocation2 + $0xd0] sm:$0xf] %v292
    %305 = vst [vmem:[#allocation2 + $0xd8] sm:$0xf] %v293
    %306 = vst [vmem:[#allocation2 + $0xe0] sm:$0xf] %v294
    %307 = vst [vmem:[#allocation2 + $0xe8] sm:$0xf] %v295
    %308 = vst [vmem:[#allocation1] ss:$2 sm:$0xff] %v35
    %s309 = scalar_lea.vmem [#allocation1], 16
    %310 = vst [vmem:[%s309] ss:$2 sm:$0xff] %v36
    %s311 = scalar_lea.vmem [#allocation1], 32
    %312 = vst [vmem:[%s311] ss:$2 sm:$0xff] %v37
    %s313 = scalar_lea.vmem [#allocation1], 48
    %314 = vst [vmem:[%s313] ss:$2 sm:$0xff] %v38
    %v315 = vld.sshfl [vmem:[#allocation1] sm:$0xff pattern:$0x75316420]
    %v316 = vld.sshfl [vmem:[#allocation1 + $0x8] sm:$0xff pattern:$0x75316420]
    %v317 = vld.sshfl [vmem:[#allocation1 + $0x10] sm:$0xff pattern:$0x75316420]
    %v318 = vld.sshfl [vmem:[#allocation1 + $0x18] sm:$0xff pattern:$0x75316420]
    %v319 = vld.sshfl [vmem:[#allocation1 + $0x20] sm:$0xff pattern:$0x75316420]
    %v320 = vld.sshfl [vmem:[#allocation1 + $0x28] sm:$0xff pattern:$0x75316420]
    %v321 = vld.sshfl [vmem:[#allocation1 + $0x30] sm:$0xff pattern:$0x75316420]
    %322 = vrot.lane.b32.xlu0 %v315, 108
    %v323 = vpop.permute.xlu0 %322
    %324 = vrot.lane.b32.xlu0 %v316, 108
    %v325 = vpop.permute.xlu0 %324
    %326 = vrot.lane.b32.xlu0 %v317, 108
    %v327 = vpop.permute.xlu0 %326
    %328 = vrot.lane.b32.xlu0 %v318, 108
    %v329 = vpop.permute.xlu0 %328
    %330 = vrot.lane.b32.xlu0 %v319, 108
    %v331 = vpop.permute.xlu0 %330
    %332 = vrot.lane.b32.xlu0 %v320, 108
    %v333 = vpop.permute.xlu0 %332
    %334 = vrot.lane.b32.xlu0 %v321, 108
    %v335 = vpop.permute.xlu0 %334
    %vm336 = vcmask 883712
    %v337 = vsel %vm336, %v323, %v325
    %v338 = vsel %vm336, %v325, %v327
    %v339 = vsel %vm336, %v327, %v329
    %v340 = vsel %vm336, %v329, %v331
    %v341 = vsel %vm336, %v331, %v333
    %v342 = vsel %vm336, %v333, %v335
    %349 = vst [vmem:[#allocation2 + $0xf0] sm:$0xf] %v337
    %350 = vst [vmem:[#allocation2 + $0xf8] sm:$0xf] %v338
    %351 = vst [vmem:[#allocation2 + $0x100] sm:$0xf] %v339
    %352 = vst [vmem:[#allocation2 + $0x108] sm:$0xf] %v340
    %353 = vst [vmem:[#allocation2 + $0x110] sm:$0xf] %v341
    %354 = vst [vmem:[#allocation2 + $0x118] sm:$0xf] %v342
    %355 = vst [vmem:[#allocation1] ss:$2 sm:$0xff] %v35
    %s356 = scalar_lea.vmem [#allocation1], 16
    %357 = vst [vmem:[%s356] ss:$2 sm:$0xff] %v36
    %s358 = scalar_lea.vmem [#allocation1], 32
    %359 = vst [vmem:[%s358] ss:$2 sm:$0xff] %v37
    %s360 = scalar_lea.vmem [#allocation1], 48
    %361 = vst [vmem:[%s360] ss:$2 sm:$0xff] %v38
    %v362 = vld.sshfl [vmem:[#allocation1] sm:$0xff pattern:$0x75316420]
    %v363 = vld.sshfl [vmem:[#allocation1 + $0x8] sm:$0xff pattern:$0x75316420]
    %v364 = vld.sshfl [vmem:[#allocation1 + $0x10] sm:$0xff pattern:$0x75316420]
    %v365 = vld.sshfl [vmem:[#allocation1 + $0x18] sm:$0xff pattern:$0x75316420]
    %v366 = vld.sshfl [vmem:[#allocation1 + $0x20] sm:$0xff pattern:$0x75316420]
    %v367 = vld.sshfl [vmem:[#allocation1 + $0x28] sm:$0xff pattern:$0x75316420]
    %v368 = vld.sshfl [vmem:[#allocation1 + $0x30] sm:$0xff pattern:$0x75316420]
    %369 = vrot.lane.b32.xlu0 %v362, 92
    %v370 = vpop.permute.xlu0 %369
    %371 = vrot.lane.b32.xlu0 %v363, 92
    %v372 = vpop.permute.xlu0 %371
    %373 = vrot.lane.b32.xlu0 %v364, 92
    %v374 = vpop.permute.xlu0 %373
    %375 = vrot.lane.b32.xlu0 %v365, 92
    %v376 = vpop.permute.xlu0 %375
    %377 = vrot.lane.b32.xlu0 %v366, 92
    %v378 = vpop.permute.xlu0 %377
    %379 = vrot.lane.b32.xlu0 %v367, 92
    %v380 = vpop.permute.xlu0 %379
    %381 = vrot.lane.b32.xlu0 %v368, 92
    %v382 = vpop.permute.xlu0 %381
    %vm383 = vcmask 752640
    %v384 = vsel %vm383, %v370, %v372
    %v385 = vsel %vm383, %v372, %v374
    %v386 = vsel %vm383, %v374, %v376
    %v387 = vsel %vm383, %v376, %v378
    %v388 = vsel %vm383, %v378, %v380
    %v389 = vsel %vm383, %v380, %v382
    %396 = vst [vmem:[#allocation2 + $0x120] sm:$0xf] %v384
    %397 = vst [vmem:[#allocation2 + $0x128] sm:$0xf] %v385
    %398 = vst [vmem:[#allocation2 + $0x130] sm:$0xf] %v386
    %399 = vst [vmem:[#allocation2 + $0x138] sm:$0xf] %v387
    %400 = vst [vmem:[#allocation2 + $0x140] sm:$0xf] %v388
    %401 = vst [vmem:[#allocation2 + $0x148] sm:$0xf] %v389
    %402 = vst [vmem:[#allocation1] ss:$2 sm:$0xff] %v35
    %s403 = scalar_lea.vmem [#allocation1], 16
    %404 = vst [vmem:[%s403] ss:$2 sm:$0xff] %v36
    %s405 = scalar_lea.vmem [#allocation1], 32
    %406 = vst [vmem:[%s405] ss:$2 sm:$0xff] %v37
    %s407 = scalar_lea.vmem [#allocation1], 48
    %408 = vst [vmem:[%s407] ss:$2 sm:$0xff] %v38
    %v409 = vld.sshfl [vmem:[#allocation1] sm:$0xff pattern:$0x75316420]
    %v410 = vld.sshfl [vmem:[#allocation1 + $0x8] sm:$0xff pattern:$0x75316420]
    %v411 = vld.sshfl [vmem:[#allocation1 + $0x10] sm:$0xff pattern:$0x75316420]
    %v412 = vld.sshfl [vmem:[#allocation1 + $0x18] sm:$0xff pattern:$0x75316420]
    %v413 = vld.sshfl [vmem:[#allocation1 + $0x20] sm:$0xff pattern:$0x75316420]
    %v414 = vld.sshfl [vmem:[#allocation1 + $0x28] sm:$0xff pattern:$0x75316420]
    %v415 = vld.sshfl [vmem:[#allocation1 + $0x30] sm:$0xff pattern:$0x75316420]
    %416 = vrot.lane.b32.xlu0 %v409, 91
    %v417 = vpop.permute.xlu0 %416
    %418 = vrot.lane.b32.xlu0 %v410, 91
    %v419 = vpop.permute.xlu0 %418
    %420 = vrot.lane.b32.xlu0 %v411, 91
    %v421 = vpop.permute.xlu0 %420
    %422 = vrot.lane.b32.xlu0 %v412, 91
    %v423 = vpop.permute.xlu0 %422
    %424 = vrot.lane.b32.xlu0 %v413, 91
    %v425 = vpop.permute.xlu0 %424
    %426 = vrot.lane.b32.xlu0 %v414, 91
    %v427 = vpop.permute.xlu0 %426
    %428 = vrot.lane.b32.xlu0 %v415, 91
    %v429 = vpop.permute.xlu0 %428
    %vm430 = vcmask 744448
    %v431 = vsel %vm430, %v417, %v419
    %v432 = vsel %vm430, %v419, %v421
    %v433 = vsel %vm430, %v421, %v423
    %v434 = vsel %vm430, %v423, %v425
    %v435 = vsel %vm430, %v425, %v427
    %v436 = vsel %vm430, %v427, %v429
    %443 = vst [vmem:[#allocation2 + $0x150] sm:$0xf] %v431
    %444 = vst [vmem:[#allocation2 + $0x158] sm:$0xf] %v432
    %445 = vst [vmem:[#allocation2 + $0x160] sm:$0xf] %v433
    %446 = vst [vmem:[#allocation2 + $0x168] sm:$0xf] %v434
    %447 = vst [vmem:[#allocation2 + $0x170] sm:$0xf] %v435
    %448 = vst [vmem:[#allocation2 + $0x178] sm:$0xf] %v436
    %449 = vst [vmem:[#allocation1] ss:$2 sm:$0xff] %v35
    %s450 = scalar_lea.vmem [#allocation1], 16
    %451 = vst [vmem:[%s450] ss:$2 sm:$0xff] %v36
    %s452 = scalar_lea.vmem [#allocation1], 32
    %453 = vst [vmem:[%s452] ss:$2 sm:$0xff] %v37
    %s454 = scalar_lea.vmem [#allocation1], 48
    %455 = vst [vmem:[%s454] ss:$2 sm:$0xff] %v38
    %v456 = vld.sshfl [vmem:[#allocation1] sm:$0xff pattern:$0x75316420]
    %v457 = vld.sshfl [vmem:[#allocation1 + $0x8] sm:$0xff pattern:$0x75316420]
    %v458 = vld.sshfl [vmem:[#allocation1 + $0x10] sm:$0xff pattern:$0x75316420]
    %v459 = vld.sshfl [vmem:[#allocation1 + $0x18] sm:$0xff pattern:$0x75316420]
    %v460 = vld.sshfl [vmem:[#allocation1 + $0x20] sm:$0xff pattern:$0x75316420]
    %v461 = vld.sshfl [vmem:[#allocation1 + $0x28] sm:$0xff pattern:$0x75316420]
    %v462 = vld.sshfl [vmem:[#allocation1 + $0x30] sm:$0xff pattern:$0x75316420]
    %463 = vrot.lane.b32.xlu0 %v456, 90
    %v464 = vpop.permute.xlu0 %463
    %465 = vrot.lane.b32.xlu0 %v457, 90
    %v466 = vpop.permute.xlu0 %465
    %467 = vrot.lane.b32.xlu0 %v458, 90
    %v468 = vpop.permute.xlu0 %467
    %469 = vrot.lane.b32.xlu0 %v459, 90
    %v470 = vpop.permute.xlu0 %469
    %471 = vrot.lane.b32.xlu0 %v460, 90
    %v472 = vpop.permute.xlu0 %471
    %473 = vrot.lane.b32.xlu0 %v461, 90
    %v474 = vpop.permute.xlu0 %473
    %475 = vrot.lane.b32.xlu0 %v462, 90
    %v476 = vpop.permute.xlu0 %475
    %vm477 = vcmask 736256
    %v478 = vsel %vm477, %v464, %v466
    %v479 = vsel %vm477, %v466, %v468
    %v480 = vsel %vm477, %v468, %v470
    %v481 = vsel %vm477, %v470, %v472
    %v482 = vsel %vm477, %v472, %v474
    %v483 = vsel %vm477, %v474, %v476
    %490 = vst [vmem:[#allocation2 + $0x180] sm:$0xf] %v478
    %491 = vst [vmem:[#allocation2 + $0x188] sm:$0xf] %v479
    %492 = vst [vmem:[#allocation2 + $0x190] sm:$0xf] %v480
    %493 = vst [vmem:[#allocation2 + $0x198] sm:$0xf] %v481
    %494 = vst [vmem:[#allocation2 + $0x1a0] sm:$0xf] %v482
    %495 = vst [vmem:[#allocation2 + $0x1a8] sm:$0xf] %v483
    %v496 = vld [vmem:[%s1] sm:$0xff]
    %v497 = vld [vmem:[#allocation2] sm:$0xff]
    %v498 = vld [vmem:[#allocation2 + $0x8] sm:$0xff]
    %v499 = vld [vmem:[#allocation2 + $0x10] sm:$0xff]
    %v500 = vld [vmem:[#allocation2 + $0x18] sm:$0xff]
    %v501 = vld [vmem:[#allocation2 + $0x20] sm:$0xff]
    %v502 = vld [vmem:[#allocation2 + $0x28] sm:$0xff]
    %v503 = vld [vmem:[#allocation2 + $0x30] sm:$0xff]
    %v504 = vld [vmem:[#allocation2 + $0x38] sm:$0xff]
    %v505 = vld [vmem:[#allocation2 + $0x40] sm:$0xff]
    %v506 = vld [vmem:[#allocation2 + $0x48] sm:$0xff]
    %v507 = vld [vmem:[#allocation2 + $0x50] sm:$0xff]
    %v508 = vld [vmem:[#allocation2 + $0x58] sm:$0xff]
    %v509 = vld [vmem:[#allocation2 + $0x60] sm:$0xff]
    %v510 = vld [vmem:[#allocation2 + $0x68] sm:$0xff]
    %v511 = vld [vmem:[#allocation2 + $0x70] sm:$0xff]
    %v512 = vld [vmem:[#allocation2 + $0x78] sm:$0xff]
    %v513 = vld [vmem:[#allocation2 + $0x80] sm:$0xff]
    %v514 = vld [vmem:[#allocation2 + $0x88] sm:$0xff]
    %v515 = vld [vmem:[#allocation2 + $0x90] sm:$0xff]
    %v516 = vld [vmem:[#allocation2 + $0x98] sm:$0xff]
    %v517 = vld [vmem:[#allocation2 + $0xa0] sm:$0xff]
    %v518 = vld [vmem:[#allocation2 + $0xa8] sm:$0xff]
    %v519 = vld [vmem:[#allocation2 + $0xb0] sm:$0xff]
    %v520 = vld [vmem:[#allocation2 + $0xb8] sm:$0xff]
    %v521 = vld [vmem:[#allocation2 + $0xc0] sm:$0xff]
    %v522 = vld [vmem:[#allocation2 + $0xc8] sm:$0xff]
    %v523 = vld [vmem:[#allocation2 + $0xd0] sm:$0xff]
    %v524 = vld [vmem:[#allocation2 + $0xd8] sm:$0xff]
    %v525 = vld [vmem:[#allocation2 + $0xe0] sm:$0xff]
    %v526 = vld [vmem:[#allocation2 + $0xe8] sm:$0xff]
    %v527 = vld [vmem:[#allocation2 + $0xf0] sm:$0xff]
    %v528 = vld [vmem:[#allocation2 + $0xf8] sm:$0xff]
    %v529 = vld [vmem:[#allocation2 + $0x100] sm:$0xff]
    %v530 = vld [vmem:[#allocation2 + $0x108] sm:$0xff]
    %v531 = vld [vmem:[#allocation2 + $0x110] sm:$0xff]
    %v532 = vld [vmem:[#allocation2 + $0x118] sm:$0xff]
    %v533 = vld [vmem:[#allocation2 + $0x120] sm:$0xff]
    %v534 = vld [vmem:[#allocation2 + $0x128] sm:$0xff]
    %v535 = vld [vmem:[#allocation2 + $0x130] sm:$0xff]
    %v536 = vld [vmem:[#allocation2 + $0x138] sm:$0xff]
    %v537 = vld [vmem:[#allocation2 + $0x140] sm:$0xff]
    %v538 = vld [vmem:[#allocation2 + $0x148] sm:$0xff]
    %v539 = vld [vmem:[#allocation2 + $0x150] sm:$0xff]
    %v540 = vld [vmem:[#allocation2 + $0x158] sm:$0xff]
    %v541 = vld [vmem:[#allocation2 + $0x160] sm:$0xff]
    %v542 = vld [vmem:[#allocation2 + $0x168] sm:$0xff]
    %v543 = vld [vmem:[#allocation2 + $0x170] sm:$0xff]
    %v544 = vld [vmem:[#allocation2 + $0x178] sm:$0xff]
    %v545 = vld [vmem:[#allocation2 + $0x180] sm:$0xff]
    %v546 = vld [vmem:[#allocation2 + $0x188] sm:$0xff]
    %v547 = vld [vmem:[#allocation2 + $0x190] sm:$0xff]
    %v548 = vld [vmem:[#allocation2 + $0x198] sm:$0xff]
    %v549 = vld [vmem:[#allocation2 + $0x1a0] sm:$0xff]
    %v550 = vld [vmem:[#allocation2 + $0x1a8] sm:$0xff]
    %vm551 = vcmask 588800
    %v553 = vsel %vm551, %v496, 0
    %555 = vmatpush.msra.mxu0 0.0
    %556 = vmatpush.msra.mxu0 0.0
    %557 = vmatpush.msra.mxu0 0.0
    %558 = vmatpush.msra.mxu0 0.0
    %559 = vmatpush.msra.mxu0 0.0
    %560 = vmatpush.msra.mxu0 0.0
    %561 = vmatpush.msra.mxu0 0.0
    %562 = vmatpush.msra.mxu0 %v545
    %563 = vmatpush.msra.mxu0 %v539
    %564 = vmatpush.msra.mxu0 %v533
    %565 = vmatpush.msra.mxu0 %v527
    %566 = vmatpush.msra.mxu0 %v521
    %567 = vmatpush.msra.mxu0 %v515
    %568 = vmatpush.msra.mxu0 %v509
    %569 = vmatpush.msra.mxu0 %v503
    %570 = vmatpush.msra.mxu0 %v497
    %571 = vmatmul.f32.gmra.mxu0 %v553
    %v572 = vpop.f32.mrf.mxu0
    %v573 = vadd.f32 0.0, %v572
    %574 = vdwg.mxu0
    %575 = vmatpush.msra.mxu0 0.0
    %576 = vmatpush.msra.mxu0 0.0
    %577 = vmatpush.msra.mxu0 0.0
    %578 = vmatpush.msra.mxu0 0.0
    %579 = vmatpush.msra.mxu0 0.0
    %580 = vmatpush.msra.mxu0 0.0
    %581 = vmatpush.msra.mxu0 0.0
    %582 = vmatpush.msra.mxu0 %v546
    %583 = vmatpush.msra.mxu0 %v540
    %584 = vmatpush.msra.mxu0 %v534
    %585 = vmatpush.msra.mxu0 %v528
    %586 = vmatpush.msra.mxu0 %v522
    %587 = vmatpush.msra.mxu0 %v516
    %588 = vmatpush.msra.mxu0 %v510
    %589 = vmatpush.msra.mxu0 %v504
    %590 = vmatpush.msra.mxu0 %v498
    %591 = vmatmul.f32.gmra.mxu0 %v553
    %v592 = vpop.f32.mrf.mxu0
    %v593 = vadd.f32 0.0, %v592
    %594 = vdwg.mxu0
    %595 = vmatpush.msra.mxu0 0.0
    %596 = vmatpush.msra.mxu0 0.0
    %597 = vmatpush.msra.mxu0 0.0
    %598 = vmatpush.msra.mxu0 0.0
    %599 = vmatpush.msra.mxu0 0.0
    %600 = vmatpush.msra.mxu0 0.0
    %601 = vmatpush.msra.mxu0 0.0
    %602 = vmatpush.msra.mxu0 %v547
    %603 = vmatpush.msra.mxu0 %v541
    %604 = vmatpush.msra.mxu0 %v535
    %605 = vmatpush.msra.mxu0 %v529
    %606 = vmatpush.msra.mxu0 %v523
    %607 = vmatpush.msra.mxu0 %v517
    %608 = vmatpush.msra.mxu0 %v511
    %609 = vmatpush.msra.mxu0 %v505
    %610 = vmatpush.msra.mxu0 %v499
    %611 = vmatmul.f32.gmra.mxu0 %v553
    %v612 = vpop.f32.mrf.mxu0
    %v613 = vadd.f32 0.0, %v612
    %614 = vdwg.mxu0
    %615 = vmatpush.msra.mxu0 0.0
    %616 = vmatpush.msra.mxu0 0.0
    %617 = vmatpush.msra.mxu0 0.0
    %618 = vmatpush.msra.mxu0 0.0
    %619 = vmatpush.msra.mxu0 0.0
    %620 = vmatpush.msra.mxu0 0.0
    %621 = vmatpush.msra.mxu0 0.0
    %622 = vmatpush.msra.mxu0 %v548
    %623 = vmatpush.msra.mxu0 %v542
    %624 = vmatpush.msra.mxu0 %v536
    %625 = vmatpush.msra.mxu0 %v530
    %626 = vmatpush.msra.mxu0 %v524
    %627 = vmatpush.msra.mxu0 %v518
    %628 = vmatpush.msra.mxu0 %v512
    %629 = vmatpush.msra.mxu0 %v506
    %630 = vmatpush.msra.mxu0 %v500
    %631 = vmatmul.f32.gmra.mxu0 %v553
    %v632 = vpop.f32.mrf.mxu0
    %v633 = vadd.f32 0.0, %v632
    %634 = vdwg.mxu0
    %635 = vmatpush.msra.mxu0 0.0
    %636 = vmatpush.msra.mxu0 0.0
    %637 = vmatpush.msra.mxu0 0.0
    %638 = vmatpush.msra.mxu0 0.0
    %639 = vmatpush.msra.mxu0 0.0
    %640 = vmatpush.msra.mxu0 0.0
    %641 = vmatpush.msra.mxu0 0.0
    %642 = vmatpush.msra.mxu0 %v549
    %643 = vmatpush.msra.mxu0 %v543
    %644 = vmatpush.msra.mxu0 %v537
    %645 = vmatpush.msra.mxu0 %v531
    %646 = vmatpush.msra.mxu0 %v525
    %647 = vmatpush.msra.mxu0 %v519
    %648 = vmatpush.msra.mxu0 %v513
    %649 = vmatpush.msra.mxu0 %v507
    %650 = vmatpush.msra.mxu0 %v501
    %651 = vmatmul.f32.gmra.mxu0 %v553
    %v652 = vpop.f32.mrf.mxu0
    %v653 = vadd.f32 0.0, %v652
    %654 = vdwg.mxu0
    %655 = vmatpush.msra.mxu0 0.0
    %656 = vmatpush.msra.mxu0 0.0
    %657 = vmatpush.msra.mxu0 0.0
    %658 = vmatpush.msra.mxu0 0.0
    %659 = vmatpush.msra.mxu0 0.0
    %660 = vmatpush.msra.mxu0 0.0
    %661 = vmatpush.msra.mxu0 0.0
    %662 = vmatpush.msra.mxu0 %v550
    %663 = vmatpush.msra.mxu0 %v544
    %664 = vmatpush.msra.mxu0 %v538
    %665 = vmatpush.msra.mxu0 %v532
    %666 = vmatpush.msra.mxu0 %v526
    %667 = vmatpush.msra.mxu0 %v520
    %668 = vmatpush.msra.mxu0 %v514
    %669 = vmatpush.msra.mxu0 %v508
    %670 = vmatpush.msra.mxu0 %v502
    %671 = vmatmul.f32.gmra.mxu0 %v553
    %v672 = vpop.f32.mrf.mxu0
    %v673 = vadd.f32 0.0, %v672
    %674 = vdwg.mxu0
    %v675 = vld [vmem:[%s2] sm:$0x3f]
    %v677 = vperm.slane %v675, 0
    %v678 = vperm.slane %v675, 1
    %v679 = vperm.slane %v675, 2
    %v680 = vperm.slane %v675, 3
    %v681 = vperm.slane %v675, 4
    %v682 = vperm.slane %v675, 5
    %v689 = vmul.f32 %v573, %v677
    %v690 = vmul.f32 %v593, %v678
    %v691 = vmul.f32 %v613, %v679
    %v692 = vmul.f32 %v633, %v680
    %v693 = vmul.f32 %v653, %v681
    %v694 = vmul.f32 %v673, %v682
    %v695 = vadd.f32 %v689, %v690
    %v696 = vadd.f32 %v695, %v691
    %v697 = vadd.f32 %v696, %v692
    %v698 = vadd.f32 %v697, %v693
    %v699 = vadd.f32 %v698, %v694
    %700 = vadd.xlane.f32.xlu0 %v699
    %v701 = vpop.xlane.xlu0 %700
    %v702 = vmul.f32 %v573, %v573
    %v703 = vmul.f32 %v593, %v593
    %v704 = vmul.f32 %v613, %v613
    %v705 = vmul.f32 %v633, %v633
    %v706 = vmul.f32 %v653, %v653
    %v707 = vmul.f32 %v673, %v673
    %v708 = vmul.f32 %v702, %v677
    %v709 = vmul.f32 %v703, %v678
    %v710 = vmul.f32 %v704, %v679
    %v711 = vmul.f32 %v705, %v680
    %v712 = vmul.f32 %v706, %v681
    %v713 = vmul.f32 %v707, %v682
    %v714 = vadd.f32 %v708, %v709
    %v715 = vadd.f32 %v714, %v710
    %v716 = vadd.f32 %v715, %v711
    %v717 = vadd.f32 %v716, %v712
    %v718 = vadd.f32 %v717, %v713
    %719 = vadd.xlane.f32.xlu0 %v718
    %v720 = vpop.xlane.xlu0 %719
    %v721 = vmul.f32 %v701, 0.001953125
    %v722 = vmul.f32 %v720, 0.001953125
    %v723 = vmul.f32 %v721, %v721
    %v724 = vsub.f32 %v722, %v723
    %v725 = vadd.f32 %v724, 1e-05
    %v726 = vrsqrt.pop %v725
    %v727 = vmul.f32 %v726, %v725
    %v728 = vmul.f32 %v727, %v726
    %v729 = vmul.f32 0.5, %v728
    %v730 = vsub.f32 1.5, %v729
    %v731 = vmul.f32 %v726, %v730
    %vm732 = vweird.f32 %v725
    %vm733 = vweird.f32 %v726
    %vm734 = vmor %vm732, %vm733
    %v735 = vsel %vm734, %v726, %v731
    %v736 = vld [vmem:[%s3] sm:$0xff]
    %v737 = vmul.f32 %v736, %v735
    %v738 = vld [vmem:[%s4] sm:$0xff]
    %v739 = vmul.f32 %v721, %v737
    %v740 = vsub.f32 %v738, %v739
    %742 = vset.pattern.permute.xlu0 0
    %743 = vperm.xlu0 %742, %v737
    %v744 = vpop.permute.xlu0 %743
    %v746 = vmul.f32 %v573, %v744
    %v747 = vmul.f32 %v593, %v744
    %v748 = vmul.f32 %v613, %v744
    %v749 = vmul.f32 %v633, %v744
    %v750 = vmul.f32 %v653, %v744
    %v751 = vmul.f32 %v673, %v744
    %753 = vset.pattern.permute.xlu0 0
    %754 = vperm.xlu0 %753, %v740
    %v755 = vpop.permute.xlu0 %754
    %v757 = vadd.f32 %v746, %v755
    %v758 = vadd.f32 %v747, %v755
    %v759 = vadd.f32 %v748, %v755
    %v760 = vadd.f32 %v749, %v755
    %v761 = vadd.f32 %v750, %v755
    %v762 = vadd.f32 %v751, %v755
    %763 = vst [vmem:[#allocation6] sm:$0xff] %v757
    %764 = vst [vmem:[#allocation6 + $0x8] sm:$0xff] %v758
    %765 = vst [vmem:[#allocation6 + $0x10] sm:$0xff] %v759
    %766 = vst [vmem:[#allocation6 + $0x18] sm:$0xff] %v760
    %767 = vst [vmem:[#allocation6 + $0x20] sm:$0xff] %v761
    %768 = vst [vmem:[#allocation6 + $0x28] sm:$0xff] %v762
    // Predicated region
    $region26: #{tpu_custom_call.1} parent=1 // pred_check
      _
    $region27: #{tpu_custom_call.1} parent=1 // pred_check_branch
      %770 = sbr.rel (0) target = $region29
    $region28: #{tpu_custom_call.1} parent=1 // pred_region
      %772 = vsyncadd [#allocation5], 0
      %s774 = sshll.u32 [#allocation6], 4
      %s775 = int_to_ptr.vmem [resolvable:$true] %s774
      %s776 = sshll.u32 %s5, 4
      %s777 = int_to_ptr.hbm [resolvable:$true] %s776
      %779 = dma.vmem_to_hbm [thread:$0]  %s775, 768, %s777, [#allocation5]
    $region29: #{tpu_custom_call.1} parent=1 // pred_fallthru
      _
    // Predicated region
    $region30: #{tpu_custom_call.1} parent=1 // pred_check
      _
    $region31: #{tpu_custom_call.1} parent=1 // pred_check_branch
      %781 = sbr.rel (0) target = $region33
    $region32: #{tpu_custom_call.1} parent=1 // pred_region
      %783 = dma.done [#allocation5], 768
    $region33: #{tpu_custom_call.1} parent=1 // pred_fallthru
      _
    %784 = vsyncpa [#allocation4], 1
    %785 = vsyncpa [#allocation5], 1

</llo_original>
